<compile_context>
chip_gen: v7x
topology: tpu7x:2x2x1
jax: 0.10.0
libtpu: 0.0.40
codegen_flags: <defaults>
</compile_context>

<pallas_src>
import functools
import math

import numpy as np
import jax
import jax.numpy as jnp
from jax import lax
from jax.experimental import pallas as pl
from jax.experimental.pallas import tpu as pltpu


# ----------------------------------------------------------------------------
# Host-side constant matrices (static given H, W, bins)
# ----------------------------------------------------------------------------

def _adaptive_pool_matrix(n, b):
    """(b, n) matrix implementing 1-D adaptive average pooling with PyTorch's
    start=floor(i*n/b), end=ceil((i+1)*n/b) windows."""
    m = np.zeros((b, n), np.float32)
    for i in range(b):
        s = (i * n) // b
        e = ((i + 1) * n + b - 1) // b
        m[i, s:e] = 1.0 / (e - s)
    return m


def _bilinear_matrix(n_out, n_in):
    """(n_out, n_in) matrix implementing 1-D bilinear interpolation with
    align_corners=True (PyTorch F.interpolate semantics)."""
    m = np.zeros((n_out, n_in), np.float32)
    if n_in == 1:
        m[:, 0] = 1.0
        return m
    for i in range(n_out):
        src = 0.0 if n_out == 1 else i * (n_in - 1) / (n_out - 1)
        i0 = min(int(math.floor(src)), n_in - 1)
        i1 = min(i0 + 1, n_in - 1)
        t = src - i0
        m[i, i0] += 1.0 - t
        m[i, i1] += t
    return m


# ----------------------------------------------------------------------------
# Fused Pallas kernel: one grid step == one batch element
# ----------------------------------------------------------------------------

def _ppm_kernel(*refs, bins, eps):
    # refs = (x, poolT, w_all, gamma, beta, M_1..M_nb, out)
    nb = len(bins)
    x_ref, poolT_ref, w_ref, g_ref, b_ref = refs[:5]
    m_refs = refs[5:5 + nb]
    o_ref = refs[5 + nb]

    x = x_ref[0].astype(jnp.float32)                       # (C, HW), lane-dense

    # All-bin adaptive average pooling in one MXU pass: (C,HW)@(HW,S) -> (C,S)
    pooled = jnp.dot(x, poolT_ref[...], preferred_element_type=jnp.float32)

    # All-bin 1x1 convs (bias=False) in one MXU pass: (nb*Cr,C)@(C,S)
    feat_all = jnp.dot(w_ref[...], pooled, preferred_element_type=jnp.float32)

    Cr = w_ref.shape[0] // nb
    pieces = [x]                                           # identity branch
    off = 0
    for k, bn in enumerate(bins):
        s = bn * bn
        f = feat_all[k * Cr:(k + 1) * Cr, off:off + s]     # (Cr, s)
        off += s

        # LayerNorm (WithBias) over the channel axis (rows here), f32 stats.
        mu = jnp.mean(f, axis=0, keepdims=True)
        var = jnp.mean((f - mu) * (f - mu), axis=0, keepdims=True)
        f = (f - mu) * lax.rsqrt(var + eps)
        f = f * g_ref[k * Cr:(k + 1) * Cr] + b_ref[k * Cr:(k + 1) * Cr]

        # SiLU
        f = f * jax.nn.sigmoid(f)

        # Bilinear upsample (align_corners=True) as a matmul with the
        # precomputed kron'd interpolation matrix: (Cr,s)@(s,HW) -> (Cr,HW).
        m = m_refs[k][...]
        if s == 1:
            up = f * m                                     # (Cr,1)*(1,HW)
        else:
            up = jnp.dot(f, m, preferred_element_type=jnp.float32)
        pieces.append(up)

    # Channel concat [x, up_1, ..., up_nb]; single lane-dense store.
    o_ref[0] = jnp.concatenate(pieces, axis=0).astype(o_ref.dtype)


def ppm_pallas(x_nchw, params, bins=(1, 2, 3, 6)):
    B, C, H, W = x_nchw.shape
    nb = len(bins)
    Cr = C // nb
    HW = H * W
    Ctot = C + nb * Cr

    # Constant pooling / interpolation matrices (compile-time constants).
    poolT_blocks, m_mats = [], []
    for bn in bins:
        ph = _adaptive_pool_matrix(H, bn)
        pw = _adaptive_pool_matrix(W, bn)
        poolT_blocks.append(np.kron(ph, pw).T)                       # (HW, bn*bn)
        ah = _bilinear_matrix(H, bn)
        aw = _bilinear_matrix(W, bn)
        m_mats.append(np.kron(ah, aw).T.astype(np.float32))          # (bn*bn, HW)
    poolT = np.concatenate(poolT_blocks, axis=1).astype(np.float32)  # (HW, S)
    S = poolT.shape[1]

    w_all = jnp.concatenate([params[f"w{k}"] for k in range(nb)], axis=0)  # (nb*Cr, C)
    g_all = jnp.concatenate([params[f"g{k}"] for k in range(nb)]).reshape(nb * Cr, 1)
    b_all = jnp.concatenate([params[f"b{k}"] for k in range(nb)]).reshape(nb * Cr, 1)

    x2 = x_nchw.reshape(B, C, HW)            # NCHW flattened: HW on lane axis

    kernel = functools.partial(_ppm_kernel, bins=tuple(bins), eps=1e-5)

    in_specs = [
        pl.BlockSpec((1, C, HW), lambda i: (i, 0, 0)),
        pl.BlockSpec((HW, S), lambda i: (0, 0)),
        pl.BlockSpec((nb * Cr, C), lambda i: (0, 0)),
        pl.BlockSpec((nb * Cr, 1), lambda i: (0, 0)),
        pl.BlockSpec((nb * Cr, 1), lambda i: (0, 0)),
    ]
    args = [x2, jnp.asarray(poolT), w_all, g_all, b_all]
    for m in m_mats:
        in_specs.append(pl.BlockSpec(m.shape, lambda i: (0, 0)))
        args.append(jnp.asarray(m))

    out = pl.pallas_call(
        kernel,
        out_shape=jax.ShapeDtypeStruct((B, Ctot, HW), x_nchw.dtype),
        grid=(B,),
        in_specs=in_specs,
        out_specs=pl.BlockSpec((1, Ctot, HW), lambda i: (i, 0, 0)),
        compiler_params=pltpu.CompilerParams(
            dimension_semantics=("parallel",)),
    )(*args)
    # TODO(synk): for production resolutions, tile the H*W axis (with per-tile
    # slices of poolT / M) so a block stays well under the v7x 64 MiB VMEM.
    return out.reshape(B, Ctot, H, W)


# ----------------------------------------------------------------------------
# Pure-JAX reference (separable einsum formulation) for correctness check
# ----------------------------------------------------------------------------

def ppm_ref(x, params, bins=(1, 2, 3, 6)):
    B, C, H, W = x.shape
    nb = len(bins)
    Cr = C // nb
    outs = [x]
    for k, bn in enumerate(bins):
        ph = jnp.asarray(_adaptive_pool_matrix(H, bn))
        pw = jnp.asarray(_adaptive_pool_matrix(W, bn))
        p = jnp.einsum("ih,jw,bchw->bcij", ph, pw, x)                 # adaptive pool
        f = jnp.einsum("rc,bcij->brij", params[f"w{k}"], p)           # 1x1 conv
        mu = jnp.mean(f, axis=1, keepdims=True)                       # LN over channels
        var = jnp.mean((f - mu) ** 2, axis=1, keepdims=True)
        f = (f - mu) / jnp.sqrt(var + 1e-5)
        f = f * params[f"g{k}"].reshape(1, Cr, 1, 1) + params[f"b{k}"].reshape(1, Cr, 1, 1)
        f = f * jax.nn.sigmoid(f)                                     # SiLU
        ah = jnp.asarray(_bilinear_matrix(H, bn))
        aw = jnp.asarray(_bilinear_matrix(W, bn))
        up = jnp.einsum("hi,wj,brij->brhw", ah, aw, f)                # bilinear up
        outs.append(up)
    return jnp.concatenate(outs, axis=1)


# ----------------------------------------------------------------------------
# Deterministic parameter init (shapes from the PyTorch module's __init__)
# ----------------------------------------------------------------------------

def init_params(key, C, bins):
    nb = len(bins)
    Cr = C // nb
    keys = jax.random.split(key, 3 * nb)
    p = {}
    for k in range(nb):
        s = 1.0 / math.sqrt(C)
        p[f"w{k}"] = jax.random.uniform(keys[3 * k], (Cr, C), jnp.float32, -s, s)
        # PyTorch inits LayerNorm weight/bias to ones/zeros; use randomized
        # values here so the affine path of the kernel is actually exercised.
        p[f"g{k}"] = 1.0 + 0.1 * jax.random.normal(keys[3 * k + 1], (Cr,), jnp.float32)
        p[f"b{k}"] = 0.1 * jax.random.normal(keys[3 * k + 2], (Cr,), jnp.float32)
    return p


# ----------------------------------------------------------------------------
# Main
# ----------------------------------------------------------------------------

if __name__ == "__main__":
    B, C, H, W = 2, 8, 16, 16
    bins = (1, 2, 3, 6)

    key = jax.random.PRNGKey(0)
    kx, kp = jax.random.split(key)
    x = jax.random.normal(kx, (B, C, H, W), jnp.float32)
    params = init_params(kp, C, bins)

    fwd = jax.jit(functools.partial(ppm_pallas, bins=bins))
    out = jax.block_until_ready(fwd(x, params))

    ref = jax.block_until_ready(jax.jit(functools.partial(ppm_ref, bins=bins))(x, params))

    assert out.shape == (B, 2 * C, H, W), out.shape
    assert jnp.allclose(out, ref, rtol=1e-4, atol=1e-4), (
        float(jnp.max(jnp.abs(out - ref))))
    print("KERNEL_OK")
</pallas_src>

<mosaic_0001>
module attributes {stable_mosaic.version = 11 : i64} {
  func.func @_ppm_kernel(%arg0: i32, %arg1: memref<1x8x256xf32, #tpu.memory_space<vmem>>, %arg2: memref<256x50xf32, #tpu.memory_space<vmem>>, %arg3: memref<8x8xf32, #tpu.memory_space<vmem>>, %arg4: memref<8x1xf32, #tpu.memory_space<vmem>>, %arg5: memref<8x1xf32, #tpu.memory_space<vmem>>, %arg6: memref<1x256xf32, #tpu.memory_space<vmem>>, %arg7: memref<4x256xf32, #tpu.memory_space<vmem>>, %arg8: memref<9x256xf32, #tpu.memory_space<vmem>>, %arg9: memref<36x256xf32, #tpu.memory_space<vmem>>, %arg10: memref<1x16x256xf32, #tpu.memory_space<vmem>>) attributes {dimension_semantics = [#tpu.dimension_semantics<parallel>], iteration_bounds = array<i64: 2>, scalar_prefetch = 0 : i64, scratch_operands = 0 : i64, tpu.core_type = #tpu.core_type<tc>, window_params = [{transform_indices = @transform_0, window_bounds = array<i64: 1, 8, 256>}, {pipeline_mode = #tpu.pipeline_mode<synchronous>, transform_indices = @transform_1, window_bounds = array<i64: 256, 50>}, {pipeline_mode = #tpu.pipeline_mode<synchronous>, transform_indices = @transform_2, window_bounds = array<i64: 8, 8>}, {pipeline_mode = #tpu.pipeline_mode<synchronous>, transform_indices = @transform_3, window_bounds = array<i64: 8, 1>}, {pipeline_mode = #tpu.pipeline_mode<synchronous>, transform_indices = @transform_4, window_bounds = array<i64: 8, 1>}, {pipeline_mode = #tpu.pipeline_mode<synchronous>, transform_indices = @transform_5, window_bounds = array<i64: 1, 256>}, {pipeline_mode = #tpu.pipeline_mode<synchronous>, transform_indices = @transform_6, window_bounds = array<i64: 4, 256>}, {pipeline_mode = #tpu.pipeline_mode<synchronous>, transform_indices = @transform_7, window_bounds = array<i64: 9, 256>}, {pipeline_mode = #tpu.pipeline_mode<synchronous>, transform_indices = @transform_8, window_bounds = array<i64: 36, 256>}, {transform_indices = @transform_9, window_bounds = array<i64: 1, 16, 256>}]} {
    %c0 = arith.constant 0 : index
    %c0_0 = arith.constant 0 : index
    %c0_1 = arith.constant 0 : index
    %0 = vector.load %arg1[%c0, %c0_0, %c0_1] : memref<1x8x256xf32, #tpu.memory_space<vmem>>, vector<1x8x256xf32>
    %1 = vector.shape_cast %0 : vector<1x8x256xf32> to vector<8x256xf32>
    %c0_2 = arith.constant 0 : index
    %c0_3 = arith.constant 0 : index
    %2 = vector.load %arg2[%c0_2, %c0_3] : memref<256x50xf32, #tpu.memory_space<vmem>>, vector<256x50xf32>
    %cst = arith.constant dense<0.000000e+00> : vector<8x50xf32>
    %3 = tpu.matmul %1, %2, %cst {dimension_numbers = #tpu.dot_dimension_numbers<[1], [0], [0], [1], [0, 0, 1, 1], [], []>} : vector<8x256xf32>, vector<256x50xf32>, vector<8x50xf32> -> vector<8x50xf32>
    %c0_4 = arith.constant 0 : index
    %c0_5 = arith.constant 0 : index
    %4 = vector.load %arg3[%c0_4, %c0_5] : memref<8x8xf32, #tpu.memory_space<vmem>>, vector<8x8xf32>
    %cst_6 = arith.constant dense<0.000000e+00> : vector<8x50xf32>
    %5 = tpu.matmul %4, %3, %cst_6 {dimension_numbers = #tpu.dot_dimension_numbers<[1], [0], [0], [1], [0, 0, 1, 1], [], []>} : vector<8x8xf32>, vector<8x50xf32>, vector<8x50xf32> -> vector<8x50xf32>
    %6 = vector.extract_strided_slice %5 {offsets = [0, 0], sizes = [2, 1], strides = [1, 1]} : vector<8x50xf32> to vector<2x1xf32>
    %cst_7 = arith.constant dense<0.000000e+00> : vector<1xf32>
    %7 = vector.multi_reduction <add>, %6, %cst_7 [0] : vector<2x1xf32> to vector<1xf32>
    %8 = vector.shape_cast %7 : vector<1xf32> to vector<1x1xf32>
    %cst_8 = arith.constant 2.000000e+00 : f32
    %9 = vector.broadcast %cst_8 : f32 to vector<1x1xf32>
    %10 = arith.divf %8, %9 : vector<1x1xf32>
    %11 = vector.broadcast %10 : vector<1x1xf32> to vector<2x1xf32>
    %12 = arith.subf %6, %11 : vector<2x1xf32>
    %13 = vector.broadcast %10 : vector<1x1xf32> to vector<2x1xf32>
    %14 = arith.subf %6, %13 : vector<2x1xf32>
    %15 = arith.mulf %12, %14 : vector<2x1xf32>
    %cst_9 = arith.constant dense<0.000000e+00> : vector<1xf32>
    %16 = vector.multi_reduction <add>, %15, %cst_9 [0] : vector<2x1xf32> to vector<1xf32>
    %17 = vector.shape_cast %16 : vector<1xf32> to vector<1x1xf32>
    %cst_10 = arith.constant 2.000000e+00 : f32
    %18 = vector.broadcast %cst_10 : f32 to vector<1x1xf32>
    %19 = arith.divf %17, %18 : vector<1x1xf32>
    %20 = vector.broadcast %10 : vector<1x1xf32> to vector<2x1xf32>
    %21 = arith.subf %6, %20 : vector<2x1xf32>
    %cst_11 = arith.constant 9.99999974E-6 : f32
    %22 = vector.broadcast %cst_11 : f32 to vector<1x1xf32>
    %23 = arith.addf %19, %22 : vector<1x1xf32>
    %24 = math.rsqrt %23 : vector<1x1xf32>
    %25 = vector.broadcast %24 : vector<1x1xf32> to vector<2x1xf32>
    %26 = arith.mulf %21, %25 : vector<2x1xf32>
    %c0_12 = arith.constant 0 : index
    %c0_13 = arith.constant 0 : index
    %27 = vector.load %arg4[%c0_12, %c0_13] : memref<8x1xf32, #tpu.memory_space<vmem>>, vector<2x1xf32>
    %28 = arith.mulf %26, %27 : vector<2x1xf32>
    %c0_14 = arith.constant 0 : index
    %c0_15 = arith.constant 0 : index
    %29 = vector.load %arg5[%c0_14, %c0_15] : memref<8x1xf32, #tpu.memory_space<vmem>>, vector<2x1xf32>
    %30 = arith.addf %28, %29 : vector<2x1xf32>
    %31 = arith.negf %30 : vector<2x1xf32>
    %32 = math.exp %31 : vector<2x1xf32>
    %cst_16 = arith.constant 1.000000e+00 : f32
    %33 = vector.broadcast %cst_16 : f32 to vector<2x1xf32>
    %34 = arith.addf %33, %32 : vector<2x1xf32>
    %35 = arith.divf %33, %34 : vector<2x1xf32>
    %36 = arith.mulf %30, %35 : vector<2x1xf32>
    %c0_17 = arith.constant 0 : index
    %c0_18 = arith.constant 0 : index
    %37 = vector.load %arg6[%c0_17, %c0_18] : memref<1x256xf32, #tpu.memory_space<vmem>>, vector<1x256xf32>
    %38 = vector.broadcast %36 : vector<2x1xf32> to vector<2x256xf32>
    %39 = vector.broadcast %37 : vector<1x256xf32> to vector<2x256xf32>
    %40 = arith.mulf %38, %39 : vector<2x256xf32>
    %41 = vector.extract_strided_slice %5 {offsets = [2, 1], sizes = [2, 4], strides = [1, 1]} : vector<8x50xf32> to vector<2x4xf32>
    %cst_19 = arith.constant dense<0.000000e+00> : vector<4xf32>
    %42 = vector.multi_reduction <add>, %41, %cst_19 [0] : vector<2x4xf32> to vector<4xf32>
    %43 = vector.shape_cast %42 : vector<4xf32> to vector<1x4xf32>
    %cst_20 = arith.constant 2.000000e+00 : f32
    %44 = vector.broadcast %cst_20 : f32 to vector<1x4xf32>
    %45 = arith.divf %43, %44 : vector<1x4xf32>
    %46 = vector.broadcast %45 : vector<1x4xf32> to vector<2x4xf32>
    %47 = arith.subf %41, %46 : vector<2x4xf32>
    %48 = vector.broadcast %45 : vector<1x4xf32> to vector<2x4xf32>
    %49 = arith.subf %41, %48 : vector<2x4xf32>
    %50 = arith.mulf %47, %49 : vector<2x4xf32>
    %cst_21 = arith.constant dense<0.000000e+00> : vector<4xf32>
    %51 = vector.multi_reduction <add>, %50, %cst_21 [0] : vector<2x4xf32> to vector<4xf32>
    %52 = vector.shape_cast %51 : vector<4xf32> to vector<1x4xf32>
    %cst_22 = arith.constant 2.000000e+00 : f32
    %53 = vector.broadcast %cst_22 : f32 to vector<1x4xf32>
    %54 = arith.divf %52, %53 : vector<1x4xf32>
    %55 = vector.broadcast %45 : vector<1x4xf32> to vector<2x4xf32>
    %56 = arith.subf %41, %55 : vector<2x4xf32>
    %cst_23 = arith.constant 9.99999974E-6 : f32
    %57 = vector.broadcast %cst_23 : f32 to vector<1x4xf32>
    %58 = arith.addf %54, %57 : vector<1x4xf32>
    %59 = math.rsqrt %58 : vector<1x4xf32>
    %60 = vector.broadcast %59 : vector<1x4xf32> to vector<2x4xf32>
    %61 = arith.mulf %56, %60 : vector<2x4xf32>
    %c2 = arith.constant 2 : index
    %c0_24 = arith.constant 0 : index
    %62 = vector.load %arg4[%c2, %c0_24] : memref<8x1xf32, #tpu.memory_space<vmem>>, vector<2x1xf32>
    %63 = vector.broadcast %62 : vector<2x1xf32> to vector<2x4xf32>
    %64 = arith.mulf %61, %63 : vector<2x4xf32>
    %c2_25 = arith.constant 2 : index
    %c0_26 = arith.constant 0 : index
    %65 = vector.load %arg5[%c2_25, %c0_26] : memref<8x1xf32, #tpu.memory_space<vmem>>, vector<2x1xf32>
    %66 = vector.broadcast %65 : vector<2x1xf32> to vector<2x4xf32>
    %67 = arith.addf %64, %66 : vector<2x4xf32>
    %68 = arith.negf %67 : vector<2x4xf32>
    %69 = math.exp %68 : vector<2x4xf32>
    %cst_27 = arith.constant 1.000000e+00 : f32
    %70 = vector.broadcast %cst_27 : f32 to vector<2x4xf32>
    %71 = arith.addf %70, %69 : vector<2x4xf32>
    %72 = arith.divf %70, %71 : vector<2x4xf32>
    %73 = arith.mulf %67, %72 : vector<2x4xf32>
    %c0_28 = arith.constant 0 : index
    %c0_29 = arith.constant 0 : index
    %74 = vector.load %arg7[%c0_28, %c0_29] : memref<4x256xf32, #tpu.memory_space<vmem>>, vector<4x256xf32>
    %cst_30 = arith.constant dense<0.000000e+00> : vector<2x256xf32>
    %75 = tpu.matmul %73, %74, %cst_30 {dimension_numbers = #tpu.dot_dimension_numbers<[1], [0], [0], [1], [0, 0, 1, 1], [], []>} : vector<2x4xf32>, vector<4x256xf32>, vector<2x256xf32> -> vector<2x256xf32>
    %76 = vector.extract_strided_slice %5 {offsets = [4, 5], sizes = [2, 9], strides = [1, 1]} : vector<8x50xf32> to vector<2x9xf32>
    %cst_31 = arith.constant dense<0.000000e+00> : vector<9xf32>
    %77 = vector.multi_reduction <add>, %76, %cst_31 [0] : vector<2x9xf32> to vector<9xf32>
    %78 = vector.shape_cast %77 : vector<9xf32> to vector<1x9xf32>
    %cst_32 = arith.constant 2.000000e+00 : f32
    %79 = vector.broadcast %cst_32 : f32 to vector<1x9xf32>
    %80 = arith.divf %78, %79 : vector<1x9xf32>
    %81 = vector.broadcast %80 : vector<1x9xf32> to vector<2x9xf32>
    %82 = arith.subf %76, %81 : vector<2x9xf32>
    %83 = vector.broadcast %80 : vector<1x9xf32> to vector<2x9xf32>
    %84 = arith.subf %76, %83 : vector<2x9xf32>
    %85 = arith.mulf %82, %84 : vector<2x9xf32>
    %cst_33 = arith.constant dense<0.000000e+00> : vector<9xf32>
    %86 = vector.multi_reduction <add>, %85, %cst_33 [0] : vector<2x9xf32> to vector<9xf32>
    %87 = vector.shape_cast %86 : vector<9xf32> to vector<1x9xf32>
    %cst_34 = arith.constant 2.000000e+00 : f32
    %88 = vector.broadcast %cst_34 : f32 to vector<1x9xf32>
    %89 = arith.divf %87, %88 : vector<1x9xf32>
    %90 = vector.broadcast %80 : vector<1x9xf32> to vector<2x9xf32>
    %91 = arith.subf %76, %90 : vector<2x9xf32>
    %cst_35 = arith.constant 9.99999974E-6 : f32
    %92 = vector.broadcast %cst_35 : f32 to vector<1x9xf32>
    %93 = arith.addf %89, %92 : vector<1x9xf32>
    %94 = math.rsqrt %93 : vector<1x9xf32>
    %95 = vector.broadcast %94 : vector<1x9xf32> to vector<2x9xf32>
    %96 = arith.mulf %91, %95 : vector<2x9xf32>
    %c4 = arith.constant 4 : index
    %c0_36 = arith.constant 0 : index
    %97 = vector.load %arg4[%c4, %c0_36] : memref<8x1xf32, #tpu.memory_space<vmem>>, vector<2x1xf32>
    %98 = vector.broadcast %97 : vector<2x1xf32> to vector<2x9xf32>
    %99 = arith.mulf %96, %98 : vector<2x9xf32>
    %c4_37 = arith.constant 4 : index
    %c0_38 = arith.constant 0 : index
    %100 = vector.load %arg5[%c4_37, %c0_38] : memref<8x1xf32, #tpu.memory_space<vmem>>, vector<2x1xf32>
    %101 = vector.broadcast %100 : vector<2x1xf32> to vector<2x9xf32>
    %102 = arith.addf %99, %101 : vector<2x9xf32>
    %103 = arith.negf %102 : vector<2x9xf32>
    %104 = math.exp %103 : vector<2x9xf32>
    %cst_39 = arith.constant 1.000000e+00 : f32
    %105 = vector.broadcast %cst_39 : f32 to vector<2x9xf32>
    %106 = arith.addf %105, %104 : vector<2x9xf32>
    %107 = arith.divf %105, %106 : vector<2x9xf32>
    %108 = arith.mulf %102, %107 : vector<2x9xf32>
    %c0_40 = arith.constant 0 : index
    %c0_41 = arith.constant 0 : index
    %109 = vector.load %arg8[%c0_40, %c0_41] : memref<9x256xf32, #tpu.memory_space<vmem>>, vector<9x256xf32>
    %cst_42 = arith.constant dense<0.000000e+00> : vector<2x256xf32>
    %110 = tpu.matmul %108, %109, %cst_42 {dimension_numbers = #tpu.dot_dimension_numbers<[1], [0], [0], [1], [0, 0, 1, 1], [], []>} : vector<2x9xf32>, vector<9x256xf32>, vector<2x256xf32> -> vector<2x256xf32>
    %111 = vector.extract_strided_slice %5 {offsets = [6, 14], sizes = [2, 36], strides = [1, 1]} : vector<8x50xf32> to vector<2x36xf32>
    %cst_43 = arith.constant dense<0.000000e+00> : vector<36xf32>
    %112 = vector.multi_reduction <add>, %111, %cst_43 [0] : vector<2x36xf32> to vector<36xf32>
    %113 = vector.shape_cast %112 : vector<36xf32> to vector<1x36xf32>
    %cst_44 = arith.constant 2.000000e+00 : f32
    %114 = vector.broadcast %cst_44 : f32 to vector<1x36xf32>
    %115 = arith.divf %113, %114 : vector<1x36xf32>
    %116 = vector.broadcast %115 : vector<1x36xf32> to vector<2x36xf32>
    %117 = arith.subf %111, %116 : vector<2x36xf32>
    %118 = vector.broadcast %115 : vector<1x36xf32> to vector<2x36xf32>
    %119 = arith.subf %111, %118 : vector<2x36xf32>
    %120 = arith.mulf %117, %119 : vector<2x36xf32>
    %cst_45 = arith.constant dense<0.000000e+00> : vector<36xf32>
    %121 = vector.multi_reduction <add>, %120, %cst_45 [0] : vector<2x36xf32> to vector<36xf32>
    %122 = vector.shape_cast %121 : vector<36xf32> to vector<1x36xf32>
    %cst_46 = arith.constant 2.000000e+00 : f32
    %123 = vector.broadcast %cst_46 : f32 to vector<1x36xf32>
    %124 = arith.divf %122, %123 : vector<1x36xf32>
    %125 = vector.broadcast %115 : vector<1x36xf32> to vector<2x36xf32>
    %126 = arith.subf %111, %125 : vector<2x36xf32>
    %cst_47 = arith.constant 9.99999974E-6 : f32
    %127 = vector.broadcast %cst_47 : f32 to vector<1x36xf32>
    %128 = arith.addf %124, %127 : vector<1x36xf32>
    %129 = math.rsqrt %128 : vector<1x36xf32>
    %130 = vector.broadcast %129 : vector<1x36xf32> to vector<2x36xf32>
    %131 = arith.mulf %126, %130 : vector<2x36xf32>
    %c6 = arith.constant 6 : index
    %c0_48 = arith.constant 0 : index
    %132 = vector.load %arg4[%c6, %c0_48] : memref<8x1xf32, #tpu.memory_space<vmem>>, vector<2x1xf32>
    %133 = vector.broadcast %132 : vector<2x1xf32> to vector<2x36xf32>
    %134 = arith.mulf %131, %133 : vector<2x36xf32>
    %c6_49 = arith.constant 6 : index
    %c0_50 = arith.constant 0 : index
    %135 = vector.load %arg5[%c6_49, %c0_50] : memref<8x1xf32, #tpu.memory_space<vmem>>, vector<2x1xf32>
    %136 = vector.broadcast %135 : vector<2x1xf32> to vector<2x36xf32>
    %137 = arith.addf %134, %136 : vector<2x36xf32>
    %138 = arith.negf %137 : vector<2x36xf32>
    %139 = math.exp %138 : vector<2x36xf32>
    %cst_51 = arith.constant 1.000000e+00 : f32
    %140 = vector.broadcast %cst_51 : f32 to vector<2x36xf32>
    %141 = arith.addf %140, %139 : vector<2x36xf32>
    %142 = arith.divf %140, %141 : vector<2x36xf32>
    %143 = arith.mulf %137, %142 : vector<2x36xf32>
    %c0_52 = arith.constant 0 : index
    %c0_53 = arith.constant 0 : index
    %144 = vector.load %arg9[%c0_52, %c0_53] : memref<36x256xf32, #tpu.memory_space<vmem>>, vector<36x256xf32>
    %cst_54 = arith.constant dense<0.000000e+00> : vector<2x256xf32>
    %145 = tpu.matmul %143, %144, %cst_54 {dimension_numbers = #tpu.dot_dimension_numbers<[1], [0], [0], [1], [0, 0, 1, 1], [], []>} : vector<2x36xf32>, vector<36x256xf32>, vector<2x256xf32> -> vector<2x256xf32>
    %146 = tpu.concatenate %1, %40, %75, %110, %145 in 0 : vector<8x256xf32>, vector<2x256xf32>, vector<2x256xf32>, vector<2x256xf32>, vector<2x256xf32> -> vector<16x256xf32>
    %c0_55 = arith.constant 0 : index
    %c0_56 = arith.constant 0 : index
    %c0_57 = arith.constant 0 : index
    %147 = vector.load %arg10[%c0_55, %c0_56, %c0_57] : memref<1x16x256xf32, #tpu.memory_space<vmem>>, vector<1x16x256xf32>
    %148 = vector.shape_cast %147 : vector<1x16x256xf32> to vector<16x256xf32>
    %149 = vector.shape_cast %146 : vector<16x256xf32> to vector<1x16x256xf32>
    tpu.vector_store %arg10[%c0_55, %c0_56, %c0_57], %149 {strides = array<i32>} : memref<1x16x256xf32, #tpu.memory_space<vmem>>, vector<1x16x256xf32>,
    return
  }
  func.func @transform_0(%arg0: i32) -> (i32, i32, i32) {
    %c0_i32 = arith.constant 0 : i32
    %c0_i32_0 = arith.constant 0 : i32
    %c0_i32_1 = arith.constant 0 : i32
    return %arg0, %c0_i32, %c0_i32_0 : i32, i32, i32
  }
  func.func @transform_1(%arg0: i32) -> (i32, i32) {
    %c0_i32 = arith.constant 0 : i32
    %c0_i32_0 = arith.constant 0 : i32
    %c0_i32_1 = arith.constant 0 : i32
    return %c0_i32, %c0_i32_0 : i32, i32
  }
  func.func @transform_2(%arg0: i32) -> (i32, i32) {
    %c0_i32 = arith.constant 0 : i32
    %c0_i32_0 = arith.constant 0 : i32
    %c0_i32_1 = arith.constant 0 : i32
    return %c0_i32, %c0_i32_0 : i32, i32
  }
  func.func @transform_3(%arg0: i32) -> (i32, i32) {
    %c0_i32 = arith.constant 0 : i32
    %c0_i32_0 = arith.constant 0 : i32
    %c0_i32_1 = arith.constant 0 : i32
    return %c0_i32, %c0_i32_0 : i32, i32
  }
  func.func @transform_4(%arg0: i32) -> (i32, i32) {
    %c0_i32 = arith.constant 0 : i32
    %c0_i32_0 = arith.constant 0 : i32
    %c0_i32_1 = arith.constant 0 : i32
    return %c0_i32, %c0_i32_0 : i32, i32
  }
  func.func @transform_5(%arg0: i32) -> (i32, i32) {
    %c0_i32 = arith.constant 0 : i32
    %c0_i32_0 = arith.constant 0 : i32
    %c0_i32_1 = arith.constant 0 : i32
    return %c0_i32, %c0_i32_0 : i32, i32
  }
  func.func @transform_6(%arg0: i32) -> (i32, i32) {
    %c0_i32 = arith.constant 0 : i32
    %c0_i32_0 = arith.constant 0 : i32
    %c0_i32_1 = arith.constant 0 : i32
    return %c0_i32, %c0_i32_0 : i32, i32
  }
  func.func @transform_7(%arg0: i32) -> (i32, i32) {
    %c0_i32 = arith.constant 0 : i32
    %c0_i32_0 = arith.constant 0 : i32
    %c0_i32_1 = arith.constant 0 : i32
    return %c0_i32, %c0_i32_0 : i32, i32
  }
  func.func @transform_8(%arg0: i32) -> (i32, i32) {
    %c0_i32 = arith.constant 0 : i32
    %c0_i32_0 = arith.constant 0 : i32
    %c0_i32_1 = arith.constant 0 : i32
    return %c0_i32, %c0_i32_0 : i32, i32
  }
  func.func @transform_9(%arg0: i32) -> (i32, i32, i32) {
    %c0_i32 = arith.constant 0 : i32
    %c0_i32_0 = arith.constant 0 : i32
    %c0_i32_1 = arith.constant 0 : i32
    return %arg0, %c0_i32, %c0_i32_0 : i32, i32, i32
  }
}

</mosaic_0001>

<llo_original>
// kernel: ppm_pallas.1
$region0: #{ppm_pallas.1}
  #allocation0 [shape = 'u32[]', space=smem, size = 0x4, offset = 0x4, fixed_abs, tag = 'smem constant byte address 0x4 - core index']
  #allocation1 [shape = 'u32[144,128]{1,0:T(1,128)}', space=vmem, size = 0x12000, scoped, tag = 'internal scratch']
  %s0 = inlined_call_operand.vmem [shape: f32[2,8,256], index: 0, kind: input, shape index: {}]
  %s1 = inlined_call_operand.vmem [shape: f32[256,50], index: 1, kind: input, shape index: {}]
  %s2 = inlined_call_operand.vmem [shape: f32[8,8], index: 2, kind: input, shape index: {}]
  %s3 = inlined_call_operand.vmem [shape: f32[8,1], index: 3, kind: input, shape index: {}]
  %s4 = inlined_call_operand.vmem [shape: f32[8,1], index: 4, kind: input, shape index: {}]
  %s5 = inlined_call_operand.vmem [shape: f32[1,256], index: 5, kind: input, shape index: {}]
  %s6 = inlined_call_operand.vmem [shape: f32[4,256], index: 6, kind: input, shape index: {}]
  %s7 = inlined_call_operand.vmem [shape: f32[9,256], index: 7, kind: input, shape index: {}]
  %s8 = inlined_call_operand.vmem [shape: f32[36,256], index: 8, kind: input, shape index: {}]
  %s9 = inlined_call_operand.vmem [shape: f32[2,16,256], index: 9, kind: output, shape index: {}]
  %s10 = sld [smem:[#allocation0]]
  $region69: #{ppm_pallas.1} parent=0
    _
  %s12 = ssub.s32 1, %s10
  %s13 = scalar_select 0, %s12, %s10
  loop: start=0, step=1, limit=4
  $region2: #{ppm_pallas.1} parent=0 // loop_pre_header
    _
  $region3: #{ppm_pallas.1} parent=0 // loop_header
    %s15 = sphi 0, %s19
    %p16 = scmp.ge.s32.totalorder %s15, 4
    %s25 = sphi 0, %s27
    %s28 = sphi 0, %s25
    %s29 = sphi 0, %s28
    %s45 = sphi 0, %s29
    %s49 = sphi 0, %s49
    %s51 = sphi 0, %s49
    %s52 = sphi 0, %s51
    %s66 = sphi 0, %s52
    %s70 = sphi 0, %s70
    %s72 = sphi 0, %s70
    %s73 = sphi 0, %s72
    %s87 = sphi 0, %s73
    %s91 = sphi 0, %s91
    %s93 = sphi 0, %s91
    %s94 = sphi 0, %s93
    %s108 = sphi 0, %s94
    %s112 = sphi 0, %s112
    %s114 = sphi 0, %s112
    %s115 = sphi 0, %s114
    %s129 = sphi 0, %s115
    %s133 = sphi 0, %s133
    %s135 = sphi 0, %s133
    %s136 = sphi 0, %s135
    %s150 = sphi 0, %s136
    %s154 = sphi 0, %s154
    %s156 = sphi 0, %s154
    %s157 = sphi 0, %s156
    %s171 = sphi 0, %s157
    %s175 = sphi 0, %s175
    %s177 = sphi 0, %s175
    %s178 = sphi 0, %s177
    %s192 = sphi 0, %s178
    %s196 = sphi 0, %s196
    %s198 = sphi 0, %s196
    %s199 = sphi 0, %s198
    %s213 = sphi 0, %s199
    %s219 = sphi 0, %s221
    %s222 = sphi 0, %s219
    %s223 = sphi 0, %s222
    %s239 = sphi 0, %s223
  $region4: #{ppm_pallas.1} parent=0 // loop_header_branch
    %18 = sbr.rel (%p16) target = $region8
  $region5: #{ppm_pallas.1} parent=0 // loop_body
    %s20 = ssub.s32 %s15, 1
    %s21 = ssub.s32 %s15, 2
    %s22 = sadd.s32 %s15, 1
    %s23 = ssub.s32 %s15, %s22
    %p24 = scmp.eq.s32.totalorder %s23, 0
    %s26 = sadd.s32 %s25, 1
    %s27 = scalar_select %p24, %s25, %s26
    %p30 = pneg %p24
    %p31 = scmp.eq.s32.totalorder %s15, 1
    %p32 = por %p30, %p31
    %p33 = scmp.ne.s32.totalorder %s25, %s28
    %p34 = scmp.eq.s32.totalorder %s15, 0
    %p35 = por %p33, %p34
    %p36 = scmp.ne.s32.totalorder %s25, %s28
    %p37 = scmp.eq.s32.totalorder %s20, 1
    %p38 = por %p36, %p37
    %p39 = scmp.ne.s32.totalorder %s28, %s29
    %p40 = scmp.eq.s32.totalorder %s20, 0
    %p41 = por %p39, %p40
    %p42 = scmp.ne.s32.totalorder %s28, %s29
    %p43 = scmp.eq.s32.totalorder %s21, 1
    %p44 = por %p42, %p43
    %p46 = scmp.ne.s32.totalorder %s29, %s45
    %p47 = scmp.eq.s32.totalorder %s21, 0
    %p48 = por %p46, %p47
    %s50 = sadd.s32 %s49, 1
    %p53 = scmp.eq.s32.totalorder %s15, 1
    %p54 = scmp.ne.s32.totalorder %s49, %s51
    %p55 = scmp.eq.s32.totalorder %s15, 0
    %p56 = por %p54, %p55
    %p57 = scmp.ne.s32.totalorder %s49, %s51
    %p58 = scmp.eq.s32.totalorder %s20, 1
    %p59 = por %p57, %p58
    %p60 = scmp.ne.s32.totalorder %s51, %s52
    %p61 = scmp.eq.s32.totalorder %s20, 0
    %p62 = por %p60, %p61
    %p63 = scmp.ne.s32.totalorder %s51, %s52
    %p64 = scmp.eq.s32.totalorder %s21, 1
    %p65 = por %p63, %p64
    %p67 = scmp.ne.s32.totalorder %s52, %s66
    %p68 = scmp.eq.s32.totalorder %s21, 0
    %p69 = por %p67, %p68
    %s71 = sadd.s32 %s70, 1
    %p74 = scmp.eq.s32.totalorder %s15, 1
    %p75 = scmp.ne.s32.totalorder %s70, %s72
    %p76 = scmp.eq.s32.totalorder %s15, 0
    %p77 = por %p75, %p76
    %p78 = scmp.ne.s32.totalorder %s70, %s72
    %p79 = scmp.eq.s32.totalorder %s20, 1
    %p80 = por %p78, %p79
    %p81 = scmp.ne.s32.totalorder %s72, %s73
    %p82 = scmp.eq.s32.totalorder %s20, 0
    %p83 = por %p81, %p82
    %p84 = scmp.ne.s32.totalorder %s72, %s73
    %p85 = scmp.eq.s32.totalorder %s21, 1
    %p86 = por %p84, %p85
    %p88 = scmp.ne.s32.totalorder %s73, %s87
    %p89 = scmp.eq.s32.totalorder %s21, 0
    %p90 = por %p88, %p89
    %s92 = sadd.s32 %s91, 1
    %p95 = scmp.eq.s32.totalorder %s15, 1
    %p96 = scmp.ne.s32.totalorder %s91, %s93
    %p97 = scmp.eq.s32.totalorder %s15, 0
    %p98 = por %p96, %p97
    %p99 = scmp.ne.s32.totalorder %s91, %s93
    %p100 = scmp.eq.s32.totalorder %s20, 1
    %p101 = por %p99, %p100
    %p102 = scmp.ne.s32.totalorder %s93, %s94
    %p103 = scmp.eq.s32.totalorder %s20, 0
    %p104 = por %p102, %p103
    %p105 = scmp.ne.s32.totalorder %s93, %s94
    %p106 = scmp.eq.s32.totalorder %s21, 1
    %p107 = por %p105, %p106
    %p109 = scmp.ne.s32.totalorder %s94, %s108
    %p110 = scmp.eq.s32.totalorder %s21, 0
    %p111 = por %p109, %p110
    %s113 = sadd.s32 %s112, 1
    %p116 = scmp.eq.s32.totalorder %s15, 1
    %p117 = scmp.ne.s32.totalorder %s112, %s114
    %p118 = scmp.eq.s32.totalorder %s15, 0
    %p119 = por %p117, %p118
    %p120 = scmp.ne.s32.totalorder %s112, %s114
    %p121 = scmp.eq.s32.totalorder %s20, 1
    %p122 = por %p120, %p121
    %p123 = scmp.ne.s32.totalorder %s114, %s115
    %p124 = scmp.eq.s32.totalorder %s20, 0
    %p125 = por %p123, %p124
    %p126 = scmp.ne.s32.totalorder %s114, %s115
    %p127 = scmp.eq.s32.totalorder %s21, 1
    %p128 = por %p126, %p127
    %p130 = scmp.ne.s32.totalorder %s115, %s129
    %p131 = scmp.eq.s32.totalorder %s21, 0
    %p132 = por %p130, %p131
    %s134 = sadd.s32 %s133, 1
    %p137 = scmp.eq.s32.totalorder %s15, 1
    %p138 = scmp.ne.s32.totalorder %s133, %s135
    %p139 = scmp.eq.s32.totalorder %s15, 0
    %p140 = por %p138, %p139
    %p141 = scmp.ne.s32.totalorder %s133, %s135
    %p142 = scmp.eq.s32.totalorder %s20, 1
    %p143 = por %p141, %p142
    %p144 = scmp.ne.s32.totalorder %s135, %s136
    %p145 = scmp.eq.s32.totalorder %s20, 0
    %p146 = por %p144, %p145
    %p147 = scmp.ne.s32.totalorder %s135, %s136
    %p148 = scmp.eq.s32.totalorder %s21, 1
    %p149 = por %p147, %p148
    %p151 = scmp.ne.s32.totalorder %s136, %s150
    %p152 = scmp.eq.s32.totalorder %s21, 0
    %p153 = por %p151, %p152
    %s155 = sadd.s32 %s154, 1
    %p158 = scmp.eq.s32.totalorder %s15, 1
    %p159 = scmp.ne.s32.totalorder %s154, %s156
    %p160 = scmp.eq.s32.totalorder %s15, 0
    %p161 = por %p159, %p160
    %p162 = scmp.ne.s32.totalorder %s154, %s156
    %p163 = scmp.eq.s32.totalorder %s20, 1
    %p164 = por %p162, %p163
    %p165 = scmp.ne.s32.totalorder %s156, %s157
    %p166 = scmp.eq.s32.totalorder %s20, 0
    %p167 = por %p165, %p166
    %p168 = scmp.ne.s32.totalorder %s156, %s157
    %p169 = scmp.eq.s32.totalorder %s21, 1
    %p170 = por %p168, %p169
    %p172 = scmp.ne.s32.totalorder %s157, %s171
    %p173 = scmp.eq.s32.totalorder %s21, 0
    %p174 = por %p172, %p173
    %s176 = sadd.s32 %s175, 1
    %p179 = scmp.eq.s32.totalorder %s15, 1
    %p180 = scmp.ne.s32.totalorder %s175, %s177
    %p181 = scmp.eq.s32.totalorder %s15, 0
    %p182 = por %p180, %p181
    %p183 = scmp.ne.s32.totalorder %s175, %s177
    %p184 = scmp.eq.s32.totalorder %s20, 1
    %p185 = por %p183, %p184
    %p186 = scmp.ne.s32.totalorder %s177, %s178
    %p187 = scmp.eq.s32.totalorder %s20, 0
    %p188 = por %p186, %p187
    %p189 = scmp.ne.s32.totalorder %s177, %s178
    %p190 = scmp.eq.s32.totalorder %s21, 1
    %p191 = por %p189, %p190
    %p193 = scmp.ne.s32.totalorder %s178, %s192
    %p194 = scmp.eq.s32.totalorder %s21, 0
    %p195 = por %p193, %p194
    %s197 = sadd.s32 %s196, 1
    %p200 = scmp.eq.s32.totalorder %s15, 1
    %p201 = scmp.ne.s32.totalorder %s196, %s198
    %p202 = scmp.eq.s32.totalorder %s15, 0
    %p203 = por %p201, %p202
    %p204 = scmp.ne.s32.totalorder %s196, %s198
    %p205 = scmp.eq.s32.totalorder %s20, 1
    %p206 = por %p204, %p205
    %p207 = scmp.ne.s32.totalorder %s198, %s199
    %p208 = scmp.eq.s32.totalorder %s20, 0
    %p209 = por %p207, %p208
    %p210 = scmp.ne.s32.totalorder %s198, %s199
    %p211 = scmp.eq.s32.totalorder %s21, 1
    %p212 = por %p210, %p211
    %p214 = scmp.ne.s32.totalorder %s199, %s213
    %p215 = scmp.eq.s32.totalorder %s21, 0
    %p216 = por %p214, %p215
    %s217 = ssub.s32 %s15, %s22
    %p218 = scmp.eq.s32.totalorder %s217, 0
    %s220 = sadd.s32 %s219, 1
    %s221 = scalar_select %p218, %s219, %s220
    %p224 = pneg %p218
    %p225 = scmp.eq.s32.totalorder %s15, 1
    %p226 = por %p224, %p225
    %p227 = scmp.ne.s32.totalorder %s219, %s222
    %p228 = scmp.eq.s32.totalorder %s15, 0
    %p229 = por %p227, %p228
    %p230 = scmp.ne.s32.totalorder %s219, %s222
    %p231 = scmp.eq.s32.totalorder %s20, 1
    %p232 = por %p230, %p231
    %p233 = scmp.ne.s32.totalorder %s222, %s223
    %p234 = scmp.eq.s32.totalorder %s20, 0
    %p235 = por %p233, %p234
    %p236 = scmp.ne.s32.totalorder %s222, %s223
    %p237 = scmp.eq.s32.totalorder %s21, 1
    %p238 = por %p236, %p237
    %p240 = scmp.ne.s32.totalorder %s223, %s239
    %p241 = scmp.eq.s32.totalorder %s21, 0
    %p242 = por %p240, %p241
    %p243 = scmp.le.s32.totalorder 1, %s15
    %p244 = scmp.lt.s32.totalorder %s15, 3
    %p245 = pnand %p243, %p244
    %p246 = pneg %p245
    // Predicated region
    $region9: #{ppm_pallas.1} parent=5 // pred_check
      _
    $region10: #{ppm_pallas.1} parent=5 // pred_check_branch
      %248 = sbr.rel (%p245) target = $region12
    $region11: #{ppm_pallas.1} parent=5 // pred_region
      %s249 = ssub.s32 %s15, 1
      // Predicated region
      $region13: #{ppm_pallas.1} parent=11 // pred_check
        %p250 = pneg %p62
      $region14: #{ppm_pallas.1} parent=11 // pred_check_branch
        %252 = sbr.rel (%p250) target = $region16
      $region15: #{ppm_pallas.1} parent=11 // pred_region
        _
      $region16: #{ppm_pallas.1} parent=11 // pred_fallthru
        _
      // Predicated region
      $region17: #{ppm_pallas.1} parent=11 // pred_check
        %p253 = pneg %p83
      $region18: #{ppm_pallas.1} parent=11 // pred_check_branch
        %255 = sbr.rel (%p253) target = $region20
      $region19: #{ppm_pallas.1} parent=11 // pred_region
        _
      $region20: #{ppm_pallas.1} parent=11 // pred_fallthru
        _
      // Predicated region
      $region21: #{ppm_pallas.1} parent=11 // pred_check
        %p256 = pneg %p104
      $region22: #{ppm_pallas.1} parent=11 // pred_check_branch
        %258 = sbr.rel (%p256) target = $region24
      $region23: #{ppm_pallas.1} parent=11 // pred_region
        _
      $region24: #{ppm_pallas.1} parent=11 // pred_fallthru
        _
      // Predicated region
      $region25: #{ppm_pallas.1} parent=11 // pred_check
        %p259 = pneg %p125
      $region26: #{ppm_pallas.1} parent=11 // pred_check_branch
        %261 = sbr.rel (%p259) target = $region28
      $region27: #{ppm_pallas.1} parent=11 // pred_region
        _
      $region28: #{ppm_pallas.1} parent=11 // pred_fallthru
        _
      // Predicated region
      $region29: #{ppm_pallas.1} parent=11 // pred_check
        %p262 = pneg %p146
      $region30: #{ppm_pallas.1} parent=11 // pred_check_branch
        %264 = sbr.rel (%p262) target = $region32
      $region31: #{ppm_pallas.1} parent=11 // pred_region
        _
      $region32: #{ppm_pallas.1} parent=11 // pred_fallthru
        _
      // Predicated region
      $region33: #{ppm_pallas.1} parent=11 // pred_check
        %p265 = pneg %p167
      $region34: #{ppm_pallas.1} parent=11 // pred_check_branch
        %267 = sbr.rel (%p265) target = $region36
      $region35: #{ppm_pallas.1} parent=11 // pred_region
        _
      $region36: #{ppm_pallas.1} parent=11 // pred_fallthru
        _
      // Predicated region
      $region37: #{ppm_pallas.1} parent=11 // pred_check
        %p268 = pneg %p188
      $region38: #{ppm_pallas.1} parent=11 // pred_check_branch
        %270 = sbr.rel (%p268) target = $region40
      $region39: #{ppm_pallas.1} parent=11 // pred_region
        _
      $region40: #{ppm_pallas.1} parent=11 // pred_fallthru
        _
      // Predicated region
      $region41: #{ppm_pallas.1} parent=11 // pred_check
        %p271 = pneg %p209
      $region42: #{ppm_pallas.1} parent=11 // pred_check_branch
        %273 = sbr.rel (%p271) target = $region44
      $region43: #{ppm_pallas.1} parent=11 // pred_region
        _
      $region44: #{ppm_pallas.1} parent=11 // pred_fallthru
        _
    $region12: #{ppm_pallas.1} parent=5 // pred_fallthru
      _
    %p274 = scmp.lt.s32.totalorder %s15, 2
    // Predicated region
    $region45: #{ppm_pallas.1} parent=5 // pred_check
      %p275 = pneg %p274
    $region46: #{ppm_pallas.1} parent=5 // pred_check_branch
      %277 = sbr.rel (%p275) target = $region48
    $region47: #{ppm_pallas.1} parent=5 // pred_region
      // Predicated region
      $region49: #{ppm_pallas.1} parent=47 // pred_check
        %p278 = pneg %p35
      $region50: #{ppm_pallas.1} parent=47 // pred_check_branch
        %280 = sbr.rel (%p278) target = $region52
      $region51: #{ppm_pallas.1} parent=47 // pred_region
        %p281 = scmp.lt.s32.totalorder %s15, 1
        %s282 = scalar_select %p281, %s15, 1
        %s283 = smul.addr %s282, 2
        %s284 = smul.addr %s283, 8
        %s285 = scalar_lea.vmem %s0, %s284
      $region52: #{ppm_pallas.1} parent=47 // pred_fallthru
        _
    $region48: #{ppm_pallas.1} parent=5 // pred_fallthru
      _
    %p286 = scmp.le.s32.totalorder 1, %s15
    %p287 = scmp.lt.s32.totalorder %s15, 3
    %p288 = pnand %p286, %p287
    %p289 = pneg %p288
    // Predicated region
    $region53: #{ppm_pallas.1} parent=5 // pred_check
      _
    $region54: #{ppm_pallas.1} parent=5 // pred_check_branch
      %291 = sbr.rel (%p288) target = $region56
    $region55: #{ppm_pallas.1} parent=5 // pred_region
      %s292 = ssub.s32 %s15, 1
      %p293 = scmp.lt.s32.totalorder %s20, 1
      %s294 = scalar_select %p293, %s20, 1
      %s295 = smul.addr %s294, 2
      %s296 = smul.addr %s295, 8
      %s297 = scalar_lea.vmem %s0, %s296
      %p298 = pneg %p41
      %p299 = pneg %p38
      %p300 = pneg %p62
      %p301 = pneg %p59
      %p302 = pneg %p83
      %p303 = pneg %p80
      %p304 = pneg %p104
      %p305 = pneg %p101
      %p306 = pneg %p125
      %p307 = pneg %p122
      %p308 = pneg %p146
      %p309 = pneg %p143
      %p310 = pneg %p167
      %p311 = pneg %p164
      %p312 = pneg %p188
      %p313 = pneg %p185
      %p314 = pneg %p209
      %p315 = pneg %p206
      %p316 = pneg %p235
      %p317 = pneg %p232
      %p318 = scmp.lt.s32.totalorder %s20, 1
      %s319 = scalar_select %p318, %s20, 1
      %s320 = smul.addr %s319, 4
      %s321 = smul.addr %s320, 8
      %s322 = scalar_lea.vmem %s9, %s321
      %p323 = scmp.lt.s32.totalorder %s20, 1
      %s324 = scalar_select %p323, %s20, 1
      %s325 = smul.addr %s324, 2
      %s326 = smul.addr %s325, 8
      %s327 = scalar_lea.vmem %s0, %s326
      %p328 = scmp.lt.s32.totalorder %s20, 1
      %s329 = scalar_select %p328, %s20, 1
      %s330 = smul.addr %s329, 4
      %s331 = smul.addr %s330, 8
      %s332 = scalar_lea.vmem %s9, %s331
      %v333 = vld [vmem:[%s327] sm:$0xff]
      %v334 = vld [vmem:[%s327 + $0x8] sm:$0xff]
      %v335 = vld [vmem:[%s1] sm:$0xff]
      %v336 = vld [vmem:[%s1 + $0x8] sm:$0xff]
      %v337 = vld [vmem:[%s1 + $0x10] sm:$0xff]
      %v338 = vld [vmem:[%s1 + $0x18] sm:$0xff]
      %v339 = vld [vmem:[%s1 + $0x20] sm:$0xff]
      %v340 = vld [vmem:[%s1 + $0x28] sm:$0xff]
      %v341 = vld [vmem:[%s1 + $0x30] sm:$0xff]
      %v342 = vld [vmem:[%s1 + $0x38] sm:$0xff]
      %v343 = vld [vmem:[%s1 + $0x40] sm:$0xff]
      %v344 = vld [vmem:[%s1 + $0x48] sm:$0xff]
      %v345 = vld [vmem:[%s1 + $0x50] sm:$0xff]
      %v346 = vld [vmem:[%s1 + $0x58] sm:$0xff]
      %v347 = vld [vmem:[%s1 + $0x60] sm:$0xff]
      %v348 = vld [vmem:[%s1 + $0x68] sm:$0xff]
      %v349 = vld [vmem:[%s1 + $0x70] sm:$0xff]
      %v350 = vld [vmem:[%s1 + $0x78] sm:$0xff]
      %v351 = vld [vmem:[%s1 + $0x80] sm:$0xff]
      %v352 = vld [vmem:[%s1 + $0x88] sm:$0xff]
      %v353 = vld [vmem:[%s1 + $0x90] sm:$0xff]
      %v354 = vld [vmem:[%s1 + $0x98] sm:$0xff]
      %v355 = vld [vmem:[%s1 + $0xa0] sm:$0xff]
      %v356 = vld [vmem:[%s1 + $0xa8] sm:$0xff]
      %v357 = vld [vmem:[%s1 + $0xb0] sm:$0xff]
      %v358 = vld [vmem:[%s1 + $0xb8] sm:$0xff]
      %v359 = vld [vmem:[%s1 + $0xc0] sm:$0xff]
      %v360 = vld [vmem:[%s1 + $0xc8] sm:$0xff]
      %v361 = vld [vmem:[%s1 + $0xd0] sm:$0xff]
      %v362 = vld [vmem:[%s1 + $0xd8] sm:$0xff]
      %v363 = vld [vmem:[%s1 + $0xe0] sm:$0xff]
      %v364 = vld [vmem:[%s1 + $0xe8] sm:$0xff]
      %v365 = vld [vmem:[%s1 + $0xf0] sm:$0xff]
      %v366 = vld [vmem:[%s1 + $0xf8] sm:$0xff]
      %367 = vmatprep.subr.mxu0 0.0
      %368 = vmatpush1.msra.mxu0 %v335
      %369 = vmatprep.subr.mxu0 0.0
      %370 = vmatpush1.msra.mxu0 %v336
      %371 = vmatprep.subr.mxu0 0.0
      %372 = vmatpush1.msra.mxu0 %v337
      %373 = vmatprep.subr.mxu0 0.0
      %374 = vmatpush1.msra.mxu0 %v338
      %375 = vmatprep.subr.mxu0 0.0
      %376 = vmatpush1.msra.mxu0 %v339
      %377 = vmatprep.subr.mxu0 0.0
      %378 = vmatpush1.msra.mxu0 %v340
      %379 = vmatprep.subr.mxu0 0.0
      %380 = vmatpush1.msra.mxu0 %v341
      %381 = vmatprep.subr.mxu0 0.0
      %382 = vmatpush1.msra.mxu0 %v342
      %383 = vmatprep.subr.mxu0 0.0
      %384 = vmatpush1.msra.mxu0 %v343
      %385 = vmatprep.subr.mxu0 0.0
      %386 = vmatpush1.msra.mxu0 %v344
      %387 = vmatprep.subr.mxu0 0.0
      %388 = vmatpush1.msra.mxu0 %v345
      %389 = vmatprep.subr.mxu0 0.0
      %390 = vmatpush1.msra.mxu0 %v346
      %391 = vmatprep.subr.mxu0 0.0
      %392 = vmatpush1.msra.mxu0 %v347
      %393 = vmatprep.subr.mxu0 0.0
      %394 = vmatpush1.msra.mxu0 %v348
      %395 = vmatprep.subr.mxu0 0.0
      %396 = vmatpush1.msra.mxu0 %v349
      %397 = vmatprep.subr.mxu0 0.0
      %398 = vmatpush1.msra.mxu0 %v350
      %399 = vmatprep.subr.mxu0 0.0
      %400 = vmatpush1.msra.mxu0 %v351
      %401 = vmatprep.subr.mxu0 0.0
      %402 = vmatpush1.msra.mxu0 %v352
      %403 = vmatprep.subr.mxu0 0.0
      %404 = vmatpush1.msra.mxu0 %v353
      %405 = vmatprep.subr.mxu0 0.0
      %406 = vmatpush1.msra.mxu0 %v354
      %407 = vmatprep.subr.mxu0 0.0
      %408 = vmatpush1.msra.mxu0 %v355
      %409 = vmatprep.subr.mxu0 0.0
      %410 = vmatpush1.msra.mxu0 %v356
      %411 = vmatprep.subr.mxu0 0.0
      %412 = vmatpush1.msra.mxu0 %v357
      %413 = vmatprep.subr.mxu0 0.0
      %414 = vmatpush1.msra.mxu0 %v358
      %415 = vmatprep.subr.mxu0 0.0
      %416 = vmatpush1.msra.mxu0 %v359
      %417 = vmatprep.subr.mxu0 0.0
      %418 = vmatpush1.msra.mxu0 %v360
      %419 = vmatprep.subr.mxu0 0.0
      %420 = vmatpush1.msra.mxu0 %v361
      %421 = vmatprep.subr.mxu0 0.0
      %422 = vmatpush1.msra.mxu0 %v362
      %423 = vmatprep.subr.mxu0 0.0
      %424 = vmatpush1.msra.mxu0 %v363
      %425 = vmatprep.subr.mxu0 0.0
      %426 = vmatpush1.msra.mxu0 %v364
      %427 = vmatprep.subr.mxu0 0.0
      %428 = vmatpush1.msra.mxu0 %v365
      %429 = vmatprep.subr.mxu0 0.0
      %430 = vmatpush1.msra.mxu0 %v366
      %431 = vmatprep.mubr.f32.mxu0 %v334
      %432 = vmatmul.mubr.f32.gmra.mrb[0].mxu0 %v333
      %v433 = vpop.f32.mrb[0].mxu0
      %v434 = vadd.f32 0.0, %v433
      %v435 = vpop.f32.mrb[0].mxu0
      %436 = vdwg.mxu0
      %v437 = vld [vmem:[%s2] sm:$0xff]
      %vm438 = vcmask 64512
      %v440 = vsel %vm438, %v437, 0
      %442 = vmatprep.subr.mxu0 0.0
      %443 = vmatpush1.msra.mxu0 %v434
      %444 = vmatprep.subr.mxu0 0.0
      %445 = vmatpush1.msra.mxu0 0.0
      %446 = vmatprep.subr.mxu0 0.0
      %447 = vmatpush1.msra.mxu0 0.0
      %448 = vmatprep.subr.mxu0 0.0
      %449 = vmatpush1.msra.mxu0 0.0
      %450 = vmatprep.subr.mxu0 0.0
      %451 = vmatpush1.msra.mxu0 0.0
      %452 = vmatprep.subr.mxu0 0.0
      %453 = vmatpush1.msra.mxu0 0.0
      %454 = vmatprep.subr.mxu0 0.0
      %455 = vmatpush1.msra.mxu0 0.0
      %456 = vmatprep.subr.mxu0 0.0
      %457 = vmatpush1.msra.mxu0 0.0
      %458 = vmatprep.subr.mxu0 0.0
      %459 = vmatpush1.msra.mxu0 0.0
      %460 = vmatprep.subr.mxu0 0.0
      %461 = vmatpush1.msra.mxu0 0.0
      %462 = vmatprep.subr.mxu0 0.0
      %463 = vmatpush1.msra.mxu0 0.0
      %464 = vmatprep.subr.mxu0 0.0
      %465 = vmatpush1.msra.mxu0 0.0
      %466 = vmatprep.subr.mxu0 0.0
      %467 = vmatpush1.msra.mxu0 0.0
      %468 = vmatprep.subr.mxu0 0.0
      %469 = vmatpush1.msra.mxu0 0.0
      %470 = vmatprep.subr.mxu0 0.0
      %471 = vmatpush1.msra.mxu0 0.0
      %472 = vmatprep.subr.mxu0 0.0
      %473 = vmatpush1.msra.mxu0 0.0
      %474 = vmatprep.subr.mxu0 0.0
      %475 = vmatpush1.msra.mxu0 0.0
      %476 = vmatprep.subr.mxu0 0.0
      %477 = vmatpush1.msra.mxu0 0.0
      %478 = vmatprep.subr.mxu0 0.0
      %479 = vmatpush1.msra.mxu0 0.0
      %480 = vmatprep.subr.mxu0 0.0
      %481 = vmatpush1.msra.mxu0 0.0
      %482 = vmatprep.subr.mxu0 0.0
      %483 = vmatpush1.msra.mxu0 0.0
      %484 = vmatprep.subr.mxu0 0.0
      %485 = vmatpush1.msra.mxu0 0.0
      %486 = vmatprep.subr.mxu0 0.0
      %487 = vmatpush1.msra.mxu0 0.0
      %488 = vmatprep.subr.mxu0 0.0
      %489 = vmatpush1.msra.mxu0 0.0
      %490 = vmatprep.subr.mxu0 0.0
      %491 = vmatpush1.msra.mxu0 0.0
      %492 = vmatprep.subr.mxu0 0.0
      %493 = vmatpush1.msra.mxu0 0.0
      %494 = vmatprep.subr.mxu0 0.0
      %495 = vmatpush1.msra.mxu0 0.0
      %496 = vmatprep.subr.mxu0 0.0
      %497 = vmatpush1.msra.mxu0 0.0
      %498 = vmatprep.subr.mxu0 0.0
      %499 = vmatpush1.msra.mxu0 0.0
      %500 = vmatprep.subr.mxu0 0.0
      %501 = vmatpush1.msra.mxu0 0.0
      %502 = vmatprep.subr.mxu0 0.0
      %503 = vmatpush1.msra.mxu0 0.0
      %504 = vmatprep.subr.mxu0 0.0
      %505 = vmatpush1.msra.mxu0 0.0
      %506 = vmatprep.mubr.f32.mxu0 0.0
      %507 = vmatmul.mubr.f32.gmra.mrb[0].mxu0 %v440
      %v508 = vpop.f32.mrb[0].mxu0
      %v509 = vadd.f32 0.0, %v508
      %v510 = vpop.f32.mrb[0].mxu0
      %511 = vdwg.mxu0
      %vm512 = vcmask 1024
      %v513 = vsel %vm512, %v509, 0.0
      %v514 = vrot.slane %v513, 4
      %v515 = vadd.f32 %v513, %v514
      %v516 = vrot.slane %v515, 2
      %v517 = vadd.f32 %v515, %v516
      %v518 = vrot.slane %v517, 1
      %v519 = vadd.f32 %v517, %v518
      %v520 = vrcp.pop 2.0
      %v521 = vmul.f32 %v519, %v520
      %v522 = vsub.f32 %v509, %v521
      %v523 = vmul.f32 %v522, %v522
      %v524 = vsel %vm512, %v523, 0.0
      %v525 = vrot.slane %v524, 4
      %v526 = vadd.f32 %v524, %v525
      %v527 = vrot.slane %v526, 2
      %v528 = vadd.f32 %v526, %v527
      %v529 = vrot.slane %v528, 1
      %v530 = vadd.f32 %v528, %v529
      %v531 = vmul.f32 %v530, %v520
      %v532 = vadd.f32 %v531, 1e-05
      %v533 = vrsqrt.pop %v532
      %v534 = vmul.f32 %v522, %v533
      %v535 = vld [vmem:[%s3] sm:$0x3]
      %v536 = vmul.f32 %v534, %v535
      %v537 = vld [vmem:[%s4] sm:$0x3]
      %v538 = vadd.f32 %v536, %v537
      %v539 = vxor.u32 %v538, 2147483648
      %v540 = vmul.f32 %v539, 1.442695
      %v541 = vpow.pop %v540
      %v542 = vadd.f32 %v541, 1.0
      %v543 = vrcp.pop %v542
      %v544 = vmul.f32 1.0, %v543
      %v545 = vmul.f32 %v538, %v544
      %v546 = vld [vmem:[%s5] sm:$0x3]
      %548 = vset.pattern.permute.xlu0 0
      %549 = vperm.xlu0 %548, %v545
      %v550 = vpop.permute.xlu0 %549
      %v553 = vlaneseq
      %v554 = vshrl.u32 %v553, 7
      %v555 = vsub.s32 0, %v554
      %v556 = vrot.slane %v546, %v555
      %v557 = vlaneseq
      %v558 = vshrl.u32 %v557, 7
      %v559 = vsub.s32 1, %v558
      %v560 = vrot.slane %v546, %v559
      %v563 = vmul.f32 %v550, %v556
      %v564 = vmul.f32 %v550, %v560
      %v566 = vrot.slane %v509, 2
      %vm568 = vcmask 33800
      %v569 = vsel %vm568, %v566, 0.0
      %v570 = vrot.slane %v569, 4
      %v571 = vadd.f32 %v569, %v570
      %v572 = vrot.slane %v571, 2
      %v573 = vadd.f32 %v571, %v572
      %v574 = vrot.slane %v573, 1
      %v575 = vadd.f32 %v573, %v574
      %v576 = vmul.f32 %v575, %v520
      %v577 = vsub.f32 %v509, %v576
      %v578 = vmul.f32 %v577, %v577
      %v580 = vrot.slane %v578, 2
      %v582 = vsel %vm568, %v580, 0.0
      %v583 = vrot.slane %v582, 4
      %v584 = vadd.f32 %v582, %v583
      %v585 = vrot.slane %v584, 2
      %v586 = vadd.f32 %v584, %v585
      %v587 = vrot.slane %v586, 1
      %v588 = vadd.f32 %v586, %v587
      %v589 = vmul.f32 %v588, %v520
      %v590 = vadd.f32 %v589, 1e-05
      %v591 = vrsqrt.pop %v590
      %v592 = vmul.f32 %v577, %v591
      %v593 = vld [vmem:[%s3 + $0x2] sm:$0x3]
      %595 = vset.pattern.permute.xlu0 0
      %596 = vperm.xlu0 %595, %v593
      %v597 = vpop.permute.xlu0 %596
      %v598 = vrot.slane %v597, 6
      %v600 = vmul.f32 %v592, %v598
      %v601 = vld [vmem:[%s4 + $0x2] sm:$0x3]
      %603 = vset.pattern.permute.xlu0 0
      %604 = vperm.xlu0 %603, %v601
      %v605 = vpop.permute.xlu0 %604
      %v606 = vrot.slane %v605, 6
      %v608 = vadd.f32 %v600, %v606
      %v609 = vxor.u32 %v608, 2147483648
      %v610 = vmul.f32 %v609, 1.442695
      %v611 = vpow.pop %v610
      %v612 = vadd.f32 %v611, 1.0
      %v613 = vrcp.pop %v612
      %v614 = vmul.f32 1.0, %v613
      %v615 = vmul.f32 %v608, %v614
      %v616 = vld [vmem:[%s6] sm:$0xff]
      %v618 = vrot.slane %v615, 2
      %619 = vrot.lane.b32.xlu0 %v618, 127
      %v620 = vpop.permute.xlu0 %619
      %v622 = vcombine.high %v616, %v616
      %vm623 = vcmask 31744
      %v624 = vsel %vm623, %v620, 0
      %vm626 = vcmask 1043456
      %v627 = vsel %vm626, %v616, 0
      %v629 = vsel %vm626, %v622, 0
      %631 = vmatprep.subr.mxu0 %v629
      %632 = vmatpush1.msra.mxu0 %v627
      %633 = vmatprep.subr.mxu0 0.0
      %634 = vmatpush1.msra.mxu0 0.0
      %635 = vmatprep.subr.mxu0 0.0
      %636 = vmatpush1.msra.mxu0 0.0
      %637 = vmatprep.subr.mxu0 0.0
      %638 = vmatpush1.msra.mxu0 0.0
      %639 = vmatprep.subr.mxu0 0.0
      %640 = vmatpush1.msra.mxu0 0.0
      %641 = vmatprep.subr.mxu0 0.0
      %642 = vmatpush1.msra.mxu0 0.0
      %643 = vmatprep.subr.mxu0 0.0
      %644 = vmatpush1.msra.mxu0 0.0
      %645 = vmatprep.subr.mxu0 0.0
      %646 = vmatpush1.msra.mxu0 0.0
      %647 = vmatprep.subr.mxu0 0.0
      %648 = vmatpush1.msra.mxu0 0.0
      %649 = vmatprep.subr.mxu0 0.0
      %650 = vmatpush1.msra.mxu0 0.0
      %651 = vmatprep.subr.mxu0 0.0
      %652 = vmatpush1.msra.mxu0 0.0
      %653 = vmatprep.subr.mxu0 0.0
      %654 = vmatpush1.msra.mxu0 0.0
      %655 = vmatprep.subr.mxu0 0.0
      %656 = vmatpush1.msra.mxu0 0.0
      %657 = vmatprep.subr.mxu0 0.0
      %658 = vmatpush1.msra.mxu0 0.0
      %659 = vmatprep.subr.mxu0 0.0
      %660 = vmatpush1.msra.mxu0 0.0
      %661 = vmatprep.subr.mxu0 0.0
      %662 = vmatpush1.msra.mxu0 0.0
      %663 = vmatprep.subr.mxu0 0.0
      %664 = vmatpush1.msra.mxu0 0.0
      %665 = vmatprep.subr.mxu0 0.0
      %666 = vmatpush1.msra.mxu0 0.0
      %667 = vmatprep.subr.mxu0 0.0
      %668 = vmatpush1.msra.mxu0 0.0
      %669 = vmatprep.subr.mxu0 0.0
      %670 = vmatpush1.msra.mxu0 0.0
      %671 = vmatprep.subr.mxu0 0.0
      %672 = vmatpush1.msra.mxu0 0.0
      %673 = vmatprep.subr.mxu0 0.0
      %674 = vmatpush1.msra.mxu0 0.0
      %675 = vmatprep.subr.mxu0 0.0
      %676 = vmatpush1.msra.mxu0 0.0
      %677 = vmatprep.subr.mxu0 0.0
      %678 = vmatpush1.msra.mxu0 0.0
      %679 = vmatprep.subr.mxu0 0.0
      %680 = vmatpush1.msra.mxu0 0.0
      %681 = vmatprep.subr.mxu0 0.0
      %682 = vmatpush1.msra.mxu0 0.0
      %683 = vmatprep.subr.mxu0 0.0
      %684 = vmatpush1.msra.mxu0 0.0
      %685 = vmatprep.subr.mxu0 0.0
      %686 = vmatpush1.msra.mxu0 0.0
      %687 = vmatprep.subr.mxu0 0.0
      %688 = vmatpush1.msra.mxu0 0.0
      %689 = vmatprep.subr.mxu0 0.0
      %690 = vmatpush1.msra.mxu0 0.0
      %691 = vmatprep.subr.mxu0 0.0
      %692 = vmatpush1.msra.mxu0 0.0
      %693 = vmatprep.subr.mxu0 0.0
      %694 = vmatpush1.msra.mxu0 0.0
      %695 = vmatprep.mubr.f32.mxu0 0.0
      %696 = vmatmul.mubr.f32.gmra.mrb[0].mxu0 %v624
      %v697 = vpop.f32.mrb[0].mxu0
      %v698 = vadd.f32 0.0, %v697
      %v699 = vpop.f32.mrb[0].mxu0
      %v700 = vadd.f32 0.0, %v699
      %701 = vdwg.mxu0
      %v702 = vrot.slane %v509, 4
      %vm704 = vcmask 107560
      %v705 = vsel %vm704, %v702, 0.0
      %v706 = vrot.slane %v705, 4
      %v707 = vadd.f32 %v705, %v706
      %v708 = vrot.slane %v707, 2
      %v709 = vadd.f32 %v707, %v708
      %v710 = vrot.slane %v709, 1
      %v711 = vadd.f32 %v709, %v710
      %v712 = vmul.f32 %v711, %v520
      %v713 = vsub.f32 %v509, %v712
      %v714 = vmul.f32 %v713, %v713
      %v716 = vrot.slane %v714, 4
      %v718 = vsel %vm704, %v716, 0.0
      %v719 = vrot.slane %v718, 4
      %v720 = vadd.f32 %v718, %v719
      %v721 = vrot.slane %v720, 2
      %v722 = vadd.f32 %v720, %v721
      %v723 = vrot.slane %v722, 1
      %v724 = vadd.f32 %v722, %v723
      %v725 = vmul.f32 %v724, %v520
      %v726 = vadd.f32 %v725, 1e-05
      %v727 = vrsqrt.pop %v726
      %v728 = vmul.f32 %v713, %v727
      %v729 = vld [vmem:[%s3 + $0x4] sm:$0x3]
      %731 = vset.pattern.permute.xlu0 0
      %732 = vperm.xlu0 %731, %v729
      %v733 = vpop.permute.xlu0 %732
      %v734 = vrot.slane %v733, 4
      %v736 = vmul.f32 %v728, %v734
      %v737 = vld [vmem:[%s4 + $0x4] sm:$0x3]
      %739 = vset.pattern.permute.xlu0 0
      %740 = vperm.xlu0 %739, %v737
      %v741 = vpop.permute.xlu0 %740
      %v742 = vrot.slane %v741, 4
      %v744 = vadd.f32 %v736, %v742
      %v745 = vxor.u32 %v744, 2147483648
      %v746 = vmul.f32 %v745, 1.442695
      %v747 = vpow.pop %v746
      %v748 = vadd.f32 %v747, 1.0
      %v749 = vrcp.pop %v748
      %v750 = vmul.f32 1.0, %v749
      %v751 = vmul.f32 %v744, %v750
      %v752 = vld [vmem:[%s7] sm:$0xff]
      %v753 = vld [vmem:[%s7 + $0x8] sm:$0xff]
      %v754 = vld [vmem:[%s7 + $0x10] sm:$0x1]
      %v755 = vld [vmem:[%s7 + $0x18] sm:$0x1]
      %v757 = vrot.slane %v751, 4
      %758 = vrot.lane.b32.xlu0 %v757, 123
      %v759 = vpop.permute.xlu0 %758
      %vm760 = vcmask 72704
      %v761 = vsel %vm760, %v759, 0
      %vm763 = vcmask 1040384
      %v765 = vsel %vm763, %v754, 0
      %v768 = vsel %vm763, %v755, 0
      %770 = vmatprep.subr.mxu0 %v753
      %771 = vmatpush1.msra.mxu0 %v752
      %772 = vmatprep.subr.mxu0 %v768
      %773 = vmatpush1.msra.mxu0 %v765
      %774 = vmatprep.subr.mxu0 0.0
      %775 = vmatpush1.msra.mxu0 0.0
      %776 = vmatprep.subr.mxu0 0.0
      %777 = vmatpush1.msra.mxu0 0.0
      %778 = vmatprep.subr.mxu0 0.0
      %779 = vmatpush1.msra.mxu0 0.0
      %780 = vmatprep.subr.mxu0 0.0
      %781 = vmatpush1.msra.mxu0 0.0
      %782 = vmatprep.subr.mxu0 0.0
      %783 = vmatpush1.msra.mxu0 0.0
      %784 = vmatprep.subr.mxu0 0.0
      %785 = vmatpush1.msra.mxu0 0.0
      %786 = vmatprep.subr.mxu0 0.0
      %787 = vmatpush1.msra.mxu0 0.0
      %788 = vmatprep.subr.mxu0 0.0
      %789 = vmatpush1.msra.mxu0 0.0
      %790 = vmatprep.subr.mxu0 0.0
      %791 = vmatpush1.msra.mxu0 0.0
      %792 = vmatprep.subr.mxu0 0.0
      %793 = vmatpush1.msra.mxu0 0.0
      %794 = vmatprep.subr.mxu0 0.0
      %795 = vmatpush1.msra.mxu0 0.0
      %796 = vmatprep.subr.mxu0 0.0
      %797 = vmatpush1.msra.mxu0 0.0
      %798 = vmatprep.subr.mxu0 0.0
      %799 = vmatpush1.msra.mxu0 0.0
      %800 = vmatprep.subr.mxu0 0.0
      %801 = vmatpush1.msra.mxu0 0.0
      %802 = vmatprep.subr.mxu0 0.0
      %803 = vmatpush1.msra.mxu0 0.0
      %804 = vmatprep.subr.mxu0 0.0
      %805 = vmatpush1.msra.mxu0 0.0
      %806 = vmatprep.subr.mxu0 0.0
      %807 = vmatpush1.msra.mxu0 0.0
      %808 = vmatprep.subr.mxu0 0.0
      %809 = vmatpush1.msra.mxu0 0.0
      %810 = vmatprep.subr.mxu0 0.0
      %811 = vmatpush1.msra.mxu0 0.0
      %812 = vmatprep.subr.mxu0 0.0
      %813 = vmatpush1.msra.mxu0 0.0
      %814 = vmatprep.subr.mxu0 0.0
      %815 = vmatpush1.msra.mxu0 0.0
      %816 = vmatprep.subr.mxu0 0.0
      %817 = vmatpush1.msra.mxu0 0.0
      %818 = vmatprep.subr.mxu0 0.0
      %819 = vmatpush1.msra.mxu0 0.0
      %820 = vmatprep.subr.mxu0 0.0
      %821 = vmatpush1.msra.mxu0 0.0
      %822 = vmatprep.subr.mxu0 0.0
      %823 = vmatpush1.msra.mxu0 0.0
      %824 = vmatprep.subr.mxu0 0.0
      %825 = vmatpush1.msra.mxu0 0.0
      %826 = vmatprep.subr.mxu0 0.0
      %827 = vmatpush1.msra.mxu0 0.0
      %828 = vmatprep.subr.mxu0 0.0
      %829 = vmatpush1.msra.mxu0 0.0
      %830 = vmatprep.subr.mxu0 0.0
      %831 = vmatpush1.msra.mxu0 0.0
      %832 = vmatprep.subr.mxu0 0.0
      %833 = vmatpush1.msra.mxu0 0.0
      %834 = vmatprep.mubr.f32.mxu0 0.0
      %835 = vmatmul.mubr.f32.gmra.mrb[0].mxu0 %v761
      %v836 = vpop.f32.mrb[0].mxu0
      %v837 = vadd.f32 0.0, %v836
      %v838 = vpop.f32.mrb[0].mxu0
      %v839 = vadd.f32 0.0, %v838
      %840 = vdwg.mxu0
      %v841 = vrot.slane %v509, 6
      %vm843 = vcmask 402544
      %v844 = vsel %vm843, %v841, 0.0
      %v845 = vrot.slane %v844, 4
      %v846 = vadd.f32 %v844, %v845
      %v847 = vrot.slane %v846, 2
      %v848 = vadd.f32 %v846, %v847
      %v849 = vrot.slane %v848, 1
      %v850 = vadd.f32 %v848, %v849
      %v851 = vmul.f32 %v850, %v520
      %v852 = vsub.f32 %v509, %v851
      %v853 = vmul.f32 %v852, %v852
      %v855 = vrot.slane %v853, 6
      %v857 = vsel %vm843, %v855, 0.0
      %v858 = vrot.slane %v857, 4
      %v859 = vadd.f32 %v857, %v858
      %v860 = vrot.slane %v859, 2
      %v861 = vadd.f32 %v859, %v860
      %v862 = vrot.slane %v861, 1
      %v863 = vadd.f32 %v861, %v862
      %v864 = vmul.f32 %v863, %v520
      %v865 = vadd.f32 %v864, 1e-05
      %v866 = vrsqrt.pop %v865
      %v867 = vmul.f32 %v852, %v866
      %v868 = vld [vmem:[%s3 + $0x6] sm:$0x3]
      %870 = vset.pattern.permute.xlu0 0
      %871 = vperm.xlu0 %870, %v868
      %v872 = vpop.permute.xlu0 %871
      %v873 = vrot.slane %v872, 2
      %v875 = vmul.f32 %v867, %v873
      %v876 = vld [vmem:[%s4 + $0x6] sm:$0x3]
      %878 = vset.pattern.permute.xlu0 0
      %879 = vperm.xlu0 %878, %v876
      %v880 = vpop.permute.xlu0 %879
      %v881 = vrot.slane %v880, 2
      %v883 = vadd.f32 %v875, %v881
      %v884 = vxor.u32 %v883, 2147483648
      %v885 = vmul.f32 %v884, 1.442695
      %v886 = vpow.pop %v885
      %v887 = vadd.f32 %v886, 1.0
      %v888 = vrcp.pop %v887
      %v889 = vmul.f32 1.0, %v888
      %v890 = vmul.f32 %v883, %v889
      %v891 = vld [vmem:[%s8] sm:$0xff]
      %v892 = vld [vmem:[%s8 + $0x8] sm:$0xff]
      %v893 = vld [vmem:[%s8 + $0x10] sm:$0xff]
      %v894 = vld [vmem:[%s8 + $0x18] sm:$0xff]
      %v895 = vld [vmem:[%s8 + $0x20] sm:$0xff]
      %v896 = vld [vmem:[%s8 + $0x28] sm:$0xff]
      %v897 = vld [vmem:[%s8 + $0x30] sm:$0xff]
      %v898 = vld [vmem:[%s8 + $0x38] sm:$0xff]
      %v899 = vld [vmem:[%s8 + $0x40] sm:$0xf]
      %v900 = vld [vmem:[%s8 + $0x48] sm:$0xf]
      %v902 = vrot.slane %v890, 6
      %903 = vrot.lane.b32.xlu0 %v902, 114
      %v904 = vpop.permute.xlu0 %903
      %vm905 = vcmask 293888
      %v906 = vsel %vm905, %v904, 0
      %v909 = vsel %vm626, %v899, 0
      %v912 = vsel %vm626, %v900, 0
      %914 = vmatprep.subr.mxu0 %v892
      %915 = vmatpush1.msra.mxu0 %v891
      %916 = vmatprep.subr.mxu0 %v894
      %917 = vmatpush1.msra.mxu0 %v893
      %918 = vmatprep.subr.mxu0 %v896
      %919 = vmatpush1.msra.mxu0 %v895
      %920 = vmatprep.subr.mxu0 %v898
      %921 = vmatpush1.msra.mxu0 %v897
      %922 = vmatprep.subr.mxu0 %v912
      %923 = vmatpush1.msra.mxu0 %v909
      %924 = vmatprep.subr.mxu0 0.0
      %925 = vmatpush1.msra.mxu0 0.0
      %926 = vmatprep.subr.mxu0 0.0
      %927 = vmatpush1.msra.mxu0 0.0
      %928 = vmatprep.subr.mxu0 0.0
      %929 = vmatpush1.msra.mxu0 0.0
      %930 = vmatprep.subr.mxu0 0.0
      %931 = vmatpush1.msra.mxu0 0.0
      %932 = vmatprep.subr.mxu0 0.0
      %933 = vmatpush1.msra.mxu0 0.0
      %934 = vmatprep.subr.mxu0 0.0
      %935 = vmatpush1.msra.mxu0 0.0
      %936 = vmatprep.subr.mxu0 0.0
      %937 = vmatpush1.msra.mxu0 0.0
      %938 = vmatprep.subr.mxu0 0.0
      %939 = vmatpush1.msra.mxu0 0.0
      %940 = vmatprep.subr.mxu0 0.0
      %941 = vmatpush1.msra.mxu0 0.0
      %942 = vmatprep.subr.mxu0 0.0
      %943 = vmatpush1.msra.mxu0 0.0
      %944 = vmatprep.subr.mxu0 0.0
      %945 = vmatpush1.msra.mxu0 0.0
      %946 = vmatprep.subr.mxu0 0.0
      %947 = vmatpush1.msra.mxu0 0.0
      %948 = vmatprep.subr.mxu0 0.0
      %949 = vmatpush1.msra.mxu0 0.0
      %950 = vmatprep.subr.mxu0 0.0
      %951 = vmatpush1.msra.mxu0 0.0
      %952 = vmatprep.subr.mxu0 0.0
      %953 = vmatpush1.msra.mxu0 0.0
      %954 = vmatprep.subr.mxu0 0.0
      %955 = vmatpush1.msra.mxu0 0.0
      %956 = vmatprep.subr.mxu0 0.0
      %957 = vmatpush1.msra.mxu0 0.0
      %958 = vmatprep.subr.mxu0 0.0
      %959 = vmatpush1.msra.mxu0 0.0
      %960 = vmatprep.subr.mxu0 0.0
      %961 = vmatpush1.msra.mxu0 0.0
      %962 = vmatprep.subr.mxu0 0.0
      %963 = vmatpush1.msra.mxu0 0.0
      %964 = vmatprep.subr.mxu0 0.0
      %965 = vmatpush1.msra.mxu0 0.0
      %966 = vmatprep.subr.mxu0 0.0
      %967 = vmatpush1.msra.mxu0 0.0
      %968 = vmatprep.subr.mxu0 0.0
      %969 = vmatpush1.msra.mxu0 0.0
      %970 = vmatprep.subr.mxu0 0.0
      %971 = vmatpush1.msra.mxu0 0.0
      %972 = vmatprep.subr.mxu0 0.0
      %973 = vmatpush1.msra.mxu0 0.0
      %974 = vmatprep.subr.mxu0 0.0
      %975 = vmatpush1.msra.mxu0 0.0
      %976 = vmatprep.subr.mxu0 0.0
      %977 = vmatpush1.msra.mxu0 0.0
      %978 = vmatprep.mubr.f32.mxu0 0.0
      %979 = vmatmul.mubr.f32.gmra.mrb[0].mxu0 %v906
      %v980 = vpop.f32.mrb[0].mxu0
      %v981 = vadd.f32 0.0, %v980
      %v982 = vpop.f32.mrb[0].mxu0
      %v983 = vadd.f32 0.0, %v982
      %984 = vdwg.mxu0
      %v987 = vrot.slane %v698, 6
      %v988 = vrot.slane %v700, 6
      %v993 = vrot.slane %v837, 4
      %v994 = vrot.slane %v839, 4
      %v999 = vrot.slane %v981, 2
      %v1000 = vrot.slane %v983, 2
      %vm1003 = vcmask 1041408
      %v1004 = vsel %vm1003, %v563, %v987
      %v1005 = vsel %vm1003, %v564, %v988
      %v1006 = vsel %vm626, %v1004, %v993
      %v1007 = vsel %vm626, %v1005, %v994
      %vm1008 = vcmask 1045504
      %v1009 = vsel %vm1008, %v1006, %v999
      %v1010 = vsel %vm1008, %v1007, %v1000
      %1011 = vst [vmem:[%s332] sm:$0xff] %v333
      %1012 = vst [vmem:[%s332 + $0x8] sm:$0xff] %v334
      %1013 = vst [vmem:[%s332 + $0x10] sm:$0xff] %v1009
      %1014 = vst [vmem:[%s332 + $0x18] sm:$0xff] %v1010
      %p1015 = scmp.lt.s32.totalorder %s20, 1
      %s1016 = scalar_select %p1015, %s20, 1
      %s1017 = smul.addr %s1016, 4
      %s1018 = smul.addr %s1017, 8
      %s1019 = scalar_lea.vmem %s9, %s1018
      // Predicated region
      $region57: #{ppm_pallas.1} parent=55 // pred_check
        %p1020 = pneg %p232
      $region58: #{ppm_pallas.1} parent=55 // pred_check_branch
        %1022 = sbr.rel (%p1020) target = $region60
      $region59: #{ppm_pallas.1} parent=55 // pred_region
        _
      $region60: #{ppm_pallas.1} parent=55 // pred_fallthru
        _
    $region56: #{ppm_pallas.1} parent=5 // pred_fallthru
      _
    %p1023 = scmp.le.s32.totalorder 2, %s15
    // Predicated region
    $region61: #{ppm_pallas.1} parent=5 // pred_check
      %p1024 = pneg %p1023
    $region62: #{ppm_pallas.1} parent=5 // pred_check_branch
      %1026 = sbr.rel (%p1024) target = $region64
    $region63: #{ppm_pallas.1} parent=5 // pred_region
      %s1027 = ssub.s32 %s15, 2
      // Predicated region
      $region65: #{ppm_pallas.1} parent=63 // pred_check
        %p1028 = pneg %p238
      $region66: #{ppm_pallas.1} parent=63 // pred_check_branch
        %1030 = sbr.rel (%p1028) target = $region68
      $region67: #{ppm_pallas.1} parent=63 // pred_region
        %p1031 = scmp.lt.s32.totalorder %s21, 1
        %s1032 = scalar_select %p1031, %s21, 1
        %s1033 = smul.addr %s1032, 4
        %s1034 = smul.addr %s1033, 8
        %s1035 = scalar_lea.vmem %s9, %s1034
      $region68: #{ppm_pallas.1} parent=63 // pred_fallthru
        _
    $region64: #{ppm_pallas.1} parent=5 // pred_fallthru
      _
  $region6: #{ppm_pallas.1} parent=0 // loop_footer
    %s19 = sadd.s32 1, %s15
  $region7: #{ppm_pallas.1} parent=0 // loop_footer_branch
    %14 = sbr.rel target = $region3
  $region8: #{ppm_pallas.1} parent=0 // loop_exit
    _

</llo_original>
